<compile_context>
chip_gen: v7x
topology: tpu7x:2x2x1
jax: 0.10.0
libtpu: 0.0.40
codegen_flags: <defaults>
</compile_context>

<pallas_src>
import functools

import jax
import jax.numpy as jnp
from jax.experimental import pallas as pl
from jax.experimental.pallas import tpu as pltpu


_MASK_VALUE = -1e30  # finite large-negative mask (avoids inf-inf -> NaN)


def _round_up(x, m):
    return ((x + m - 1) // m) * m


def _pick_tile(n, target, multiple=16):
    """Largest tile <= target that divides n and is a multiple of `multiple`
    (prefer 16 for bf16 sublane packing); falls back to multiple-of-8, then to
    the full extent (always legal for BlockSpec)."""
    if n <= target:
        return n
    for m in (multiple, 8):
        for t in range(min(target, n), m - 1, -1):
            if n % t == 0 and t % m == 0:
                return t
    return n


# ----------------------------- stage 1: k/v projections --------------------------

def _kv_proj_kernel(k_ref, v_ref, wk_ref, wv_ref, kv_ref):
    # Two MXU matmuls with f32 accumulation, one packed lane-dense store.
    kp = jnp.dot(k_ref[0], wk_ref[...], preferred_element_type=jnp.float32)
    vp = jnp.dot(v_ref[0], wv_ref[...], preferred_element_type=jnp.float32)
    kv_ref[0] = jnp.concatenate([kp, vp], axis=-1).astype(kv_ref.dtype)


# ----------------------------- stage 2: flash attention --------------------------

def _flash_kernel(q_ref, kv_ref, wq_ref, o_ref, qp_sc, m_sc, l_sc, acc_sc,
                  *, block_q, block_k, dh_p, approx_recip):
    qi = pl.program_id(1)
    ki = pl.program_id(2)

    @pl.when(ki == 0)
    def _init():
        # Fused q projection: done exactly once per (b, qi); the projected
        # (pre-scaled, scale folded into w_q) q tile never touches HBM.
        qp = jnp.dot(q_ref[0], wq_ref[...], preferred_element_type=jnp.float32)
        qp_sc[...] = qp.astype(qp_sc.dtype)
        m_sc[...] = jnp.full_like(m_sc, _MASK_VALUE)
        l_sc[...] = jnp.zeros_like(l_sc)
        acc_sc[...] = jnp.zeros_like(acc_sc)

    q_lo = qi * block_q                # first row of this q tile
    q_hi = q_lo + block_q - 1          # last row
    k_lo = ki * block_k                # first col of this kv tile
    k_hi = k_lo + block_k - 1          # last col

    interior = k_hi <= q_lo                                   # fully unmasked tile
    on_diag = jnp.logical_and(k_lo <= q_hi, k_hi > q_lo)      # straddles diagonal
    # (tiles with k_lo > q_hi are fully masked: no compute, and the clamped
    #  kv index_map means they were never DMA'd either)

    def _tile_update(masked):
        kv = kv_ref[0]                 # (tk, 2*dh_p) packed [kp | vp]
        kp = kv[:, :dh_p]
        vp = kv[:, dh_p:]
        # Contract head dim of both operands directly -> no kp.T transpose.
        s = jax.lax.dot_general(qp_sc[...], kp, (((1,), (1,)), ((), ())),
                                preferred_element_type=jnp.float32)  # (tq, tk)
        if masked:
            row = q_lo + jax.lax.broadcasted_iota(jnp.int32, (block_q, block_k), 0)
            col = k_lo + jax.lax.broadcasted_iota(jnp.int32, (block_q, block_k), 1)
            s = jnp.where(col <= row, s, _MASK_VALUE)
        m_prev = m_sc[...]
        m_new = jnp.maximum(m_prev, jnp.max(s, axis=-1, keepdims=True))
        alpha = jnp.exp(m_prev - m_new)
        p = jnp.exp(s - m_new)
        l_sc[...] = alpha * l_sc[...] + jnp.sum(p, axis=-1, keepdims=True)
        acc_sc[...] = alpha * acc_sc[...] + jnp.dot(
            p.astype(vp.dtype), vp, preferred_element_type=jnp.float32)
        m_sc[...] = m_new

    @pl.when(interior)
    def _interior():                   # no mask iotas / compare / select
        _tile_update(False)

    @pl.when(on_diag)
    def _diagonal():                   # mask built only on diagonal tiles
        _tile_update(True)

    @pl.when(ki == pl.num_programs(2) - 1)
    def _finalize():
        inv = pl.reciprocal(l_sc[...], approx=approx_recip)
        o_ref[0] = (acc_sc[...] * inv).astype(o_ref.dtype)


# ----------------------------- wrapper -------------------------------------------

def head_forward(q, k, v, w_q, w_k, w_v, *,
                 compute_dtype=jnp.bfloat16,
                 block_q=512, block_k=512, block_proj=512,
                 approx_recip=None):
    """q, k, v: (B, T, d_model); w_*: (d_model, d_head). Returns (B, T, d_head)."""
    B, T, d_model = q.shape
    d_head = w_q.shape[1]
    scale = float(d_head) ** -0.5
    out_dtype = q.dtype
    if approx_recip is None:
        # Approximate EUP reciprocal only on the reduced-precision path.
        approx_recip = jnp.dtype(compute_dtype) != jnp.dtype(jnp.float32)

    # Lane-dense head dim: pad to a multiple of 128 (sliced off at the end).
    dh_p = _round_up(d_head, 128)
    pad = dh_p - d_head

    def prep_w(w):
        w = w.astype(compute_dtype)
        if pad:
            w = jnp.pad(w, ((0, 0), (0, pad)))
        return w

    # Fold 1/sqrt(d_head) once into the q weight (removes per-tile scaling).
    wq_p = prep_w(w_q * scale)
    wk_p = prep_w(w_k)
    wv_p = prep_w(w_v)

    qc = q.astype(compute_dtype)
    kc = k.astype(compute_dtype)
    vc = v.astype(compute_dtype)

    sub = 16 if jnp.dtype(compute_dtype).itemsize < 4 else 8
    vmem_limit = 48 * 1024 * 1024  # explicit; fits v7x's 64 MiB physical VMEM

    # ---- stage 1: k/v projections (packed [kp|vp] output, compute dtype) ----
    # (q and k/v may be different tensors in this module, so the q projection
    #  cannot be batched into the same matmul; it is fused into stage 2 instead.)
    tp = _pick_tile(T, block_proj, sub)
    seq_spec = pl.BlockSpec((1, tp, d_model), lambda b, i: (b, i, 0))
    w_spec = pl.BlockSpec((d_model, dh_p), lambda b, i: (0, 0))
    kv_out_spec = pl.BlockSpec((1, tp, 2 * dh_p), lambda b, i: (b, i, 0))

    kv_proj = pl.pallas_call(
        _kv_proj_kernel,
        out_shape=jax.ShapeDtypeStruct((B, T, 2 * dh_p), compute_dtype),
        grid_spec=pltpu.PrefetchScalarGridSpec(
            num_scalar_prefetch=0,
            grid=(B, T // tp),
            in_specs=[seq_spec, seq_spec, w_spec, w_spec],
            out_specs=kv_out_spec,
        ),
        compiler_params=pltpu.CompilerParams(
            dimension_semantics=("parallel", "parallel"),
            vmem_limit_bytes=vmem_limit,
        ),
    )(kc, vc, wk_p, wv_p)

    # ---- stage 2: flash attention with fused q projection ----
    tq = _pick_tile(T, block_q, sub)
    tk = _pick_tile(T, block_k, sub)

    q_spec = pl.BlockSpec((1, tq, d_model), lambda b, qi, ki: (b, qi, 0))

    def kv_index_map(b, qi, ki):
        # Clamp so kv tiles strictly above the causal diagonal re-reference the
        # previous block: Pallas only DMAs when the block index changes, so the
        # ~50% of (qi, ki) iterations skipped by pl.when issue no kv loads.
        last_needed = ((qi + 1) * tq - 1) // tk
        return (b, jnp.minimum(ki, last_needed), 0)

    # NOTE: pipeline_mode=pl.Buffered(3) on kv_spec is a possible follow-up
    # sweep (large VMEM headroom on all generations).
    kv_spec = pl.BlockSpec((1, tk, 2 * dh_p), kv_index_map)
    wq_spec = pl.BlockSpec((d_model, dh_p), lambda b, qi, ki: (0, 0))
    out_spec = pl.BlockSpec((1, tq, dh_p), lambda b, qi, ki: (b, qi, 0))

    out_padded = pl.pallas_call(
        functools.partial(_flash_kernel, block_q=tq, block_k=tk, dh_p=dh_p,
                          approx_recip=approx_recip),
        out_shape=jax.ShapeDtypeStruct((B, T, dh_p), compute_dtype),
        grid_spec=pltpu.PrefetchScalarGridSpec(
            num_scalar_prefetch=0,
            grid=(B, T // tq, T // tk),
            in_specs=[q_spec, kv_spec, wq_spec],
            out_specs=out_spec,
            scratch_shapes=[
                pltpu.VMEM((tq, dh_p), compute_dtype),   # projected q tile
                pltpu.VMEM((tq, 1), jnp.float32),        # running max
                pltpu.VMEM((tq, 1), jnp.float32),        # running denominator
                pltpu.VMEM((tq, dh_p), jnp.float32),     # output accumulator
            ],
        ),
        compiler_params=pltpu.CompilerParams(
            # B and q-tiles are parallel (sharded across v7x's 2 TensorCores);
            # kv axis is the innermost reduction -> keep it "arbitrary".
            dimension_semantics=("parallel", "parallel", "arbitrary"),
            vmem_limit_bytes=vmem_limit,
        ),
    )(qc, kv_proj, wq_p)

    # Slice off head-dim padding and cast back in the wrapper (the kernel writes
    # only lane-dense, compute-dtype blocks).
    return out_padded[..., :d_head].astype(out_dtype)


def head_reference(q, k, v, w_q, w_k, w_v):
    """Pure-JAX reference mirroring the PyTorch forward (eval mode)."""
    qp = q @ w_q
    kp = k @ w_k
    vp = v @ w_v
    d_head = kp.shape[-1]
    dot = jnp.einsum("btd,bsd->bts", qp, kp) * (d_head ** -0.5)
    T = q.shape[1]
    tril = jnp.tril(jnp.ones((T, T), dtype=bool))
    dot = jnp.where(tril, dot, -jnp.inf)
    p = jax.nn.softmax(dot, axis=-1)
    return p @ vp


if __name__ == "__main__":
    # Small shapes consistent with the module: batch=2, seq_len=8, d_model=32, d_head=16.
    B, T, d_model, d_head = 2, 8, 32, 16

    key = jax.random.PRNGKey(0)
    kq, kk, kv, kwq, kwk, kwv = jax.random.split(key, 6)

    q = jax.random.normal(kq, (B, T, d_model), dtype=jnp.float32)
    k = jax.random.normal(kk, (B, T, d_model), dtype=jnp.float32)
    v = jax.random.normal(kv, (B, T, d_model), dtype=jnp.float32)

    # Deterministic parameter init (nn.Linear(d_model, d_head, bias=False) shapes,
    # stored transposed so the kernel does x @ W).
    w_scale = d_model ** -0.5
    w_q = jax.random.uniform(kwq, (d_model, d_head), jnp.float32, -w_scale, w_scale)
    w_k = jax.random.uniform(kwk, (d_model, d_head), jnp.float32, -w_scale, w_scale)
    w_v = jax.random.uniform(kwv, (d_model, d_head), jnp.float32, -w_scale, w_scale)

    ref = head_reference(q, k, v, w_q, w_k, w_v)

    # Exact-precision path (f32 compute).
    out_f32 = head_forward(q, k, v, w_q, w_k, w_v, compute_dtype=jnp.float32)
    out_f32 = jax.block_until_ready(out_f32)
    assert out_f32.shape == (B, T, d_head), out_f32.shape
    assert jnp.allclose(out_f32, ref, atol=1e-5, rtol=1e-5), float(
        jnp.max(jnp.abs(out_f32 - ref)))

    # Fast MXU path (bf16 compute, f32 accumulation, bf16 HBM intermediates).
    out_bf16 = head_forward(q, k, v, w_q, w_k, w_v, compute_dtype=jnp.bfloat16)
    out_bf16 = jax.block_until_ready(out_bf16)
    assert out_bf16.shape == (B, T, d_head), out_bf16.shape
    assert jnp.allclose(out_bf16, ref, atol=5e-2, rtol=5e-2), float(
        jnp.max(jnp.abs(out_bf16 - ref)))

    print("KERNEL_OK")
</pallas_src>

<mosaic_0001>
module attributes {stable_mosaic.version = 11 : i64} {
  func.func @_kv_proj_kernel(%arg0: i32, %arg1: i32, %arg2: memref<1x8x32xf32, #tpu.memory_space<vmem>>, %arg3: memref<1x8x32xf32, #tpu.memory_space<vmem>>, %arg4: memref<32x128xf32, #tpu.memory_space<vmem>>, %arg5: memref<32x128xf32, #tpu.memory_space<vmem>>, %arg6: memref<1x8x256xf32, #tpu.memory_space<vmem>>) attributes {dimension_semantics = [#tpu.dimension_semantics<parallel>, #tpu.dimension_semantics<parallel>], iteration_bounds = array<i64: 2, 1>, scalar_prefetch = 0 : i64, scratch_operands = 0 : i64, tpu.core_type = #tpu.core_type<tc>, window_params = [{transform_indices = @transform_0, window_bounds = array<i64: 1, 8, 32>}, {transform_indices = @transform_1, window_bounds = array<i64: 1, 8, 32>}, {pipeline_mode = #tpu.pipeline_mode<synchronous>, transform_indices = @transform_2, window_bounds = array<i64: 32, 128>}, {pipeline_mode = #tpu.pipeline_mode<synchronous>, transform_indices = @transform_3, window_bounds = array<i64: 32, 128>}, {transform_indices = @transform_4, window_bounds = array<i64: 1, 8, 256>}]} {
    %c0 = arith.constant 0 : index
    %c0_0 = arith.constant 0 : index
    %c0_1 = arith.constant 0 : index
    %0 = vector.load %arg2[%c0, %c0_0, %c0_1] : memref<1x8x32xf32, #tpu.memory_space<vmem>>, vector<1x8x32xf32>
    %1 = vector.shape_cast %0 : vector<1x8x32xf32> to vector<8x32xf32>
    %c0_2 = arith.constant 0 : index
    %c0_3 = arith.constant 0 : index
    %2 = vector.load %arg4[%c0_2, %c0_3] : memref<32x128xf32, #tpu.memory_space<vmem>>, vector<32x128xf32>
    %cst = arith.constant dense<0.000000e+00> : vector<8x128xf32>
    %3 = tpu.matmul %1, %2, %cst {dimension_numbers = #tpu.dot_dimension_numbers<[1], [0], [0], [1], [0, 0, 1, 1], [], []>} : vector<8x32xf32>, vector<32x128xf32>, vector<8x128xf32> -> vector<8x128xf32>
    %c0_4 = arith.constant 0 : index
    %c0_5 = arith.constant 0 : index
    %c0_6 = arith.constant 0 : index
    %4 = vector.load %arg3[%c0_4, %c0_5, %c0_6] : memref<1x8x32xf32, #tpu.memory_space<vmem>>, vector<1x8x32xf32>
    %5 = vector.shape_cast %4 : vector<1x8x32xf32> to vector<8x32xf32>
    %c0_7 = arith.constant 0 : index
    %c0_8 = arith.constant 0 : index
    %6 = vector.load %arg5[%c0_7, %c0_8] : memref<32x128xf32, #tpu.memory_space<vmem>>, vector<32x128xf32>
    %cst_9 = arith.constant dense<0.000000e+00> : vector<8x128xf32>
    %7 = tpu.matmul %5, %6, %cst_9 {dimension_numbers = #tpu.dot_dimension_numbers<[1], [0], [0], [1], [0, 0, 1, 1], [], []>} : vector<8x32xf32>, vector<32x128xf32>, vector<8x128xf32> -> vector<8x128xf32>
    %8 = tpu.concatenate %3, %7 in 1 : vector<8x128xf32>, vector<8x128xf32> -> vector<8x256xf32>
    %c0_10 = arith.constant 0 : index
    %c0_11 = arith.constant 0 : index
    %c0_12 = arith.constant 0 : index
    %9 = vector.load %arg6[%c0_10, %c0_11, %c0_12] : memref<1x8x256xf32, #tpu.memory_space<vmem>>, vector<1x8x256xf32>
    %10 = vector.shape_cast %9 : vector<1x8x256xf32> to vector<8x256xf32>
    %11 = vector.shape_cast %8 : vector<8x256xf32> to vector<1x8x256xf32>
    tpu.vector_store %arg6[%c0_10, %c0_11, %c0_12], %11 {strides = array<i32>} : memref<1x8x256xf32, #tpu.memory_space<vmem>>, vector<1x8x256xf32>,
    return
  }
  func.func @transform_0(%arg0: i32, %arg1: i32) -> (i32, i32, i32) {
    %c0_i32 = arith.constant 0 : i32
    %c0_i32_0 = arith.constant 0 : i32
    return %arg0, %arg1, %c0_i32 : i32, i32, i32
  }
  func.func @transform_1(%arg0: i32, %arg1: i32) -> (i32, i32, i32) {
    %c0_i32 = arith.constant 0 : i32
    %c0_i32_0 = arith.constant 0 : i32
    return %arg0, %arg1, %c0_i32 : i32, i32, i32
  }
  func.func @transform_2(%arg0: i32, %arg1: i32) -> (i32, i32) {
    %c0_i32 = arith.constant 0 : i32
    %c0_i32_0 = arith.constant 0 : i32
    %c0_i32_1 = arith.constant 0 : i32
    return %c0_i32, %c0_i32_0 : i32, i32
  }
  func.func @transform_3(%arg0: i32, %arg1: i32) -> (i32, i32) {
    %c0_i32 = arith.constant 0 : i32
    %c0_i32_0 = arith.constant 0 : i32
    %c0_i32_1 = arith.constant 0 : i32
    return %c0_i32, %c0_i32_0 : i32, i32
  }
  func.func @transform_4(%arg0: i32, %arg1: i32) -> (i32, i32, i32) {
    %c0_i32 = arith.constant 0 : i32
    %c0_i32_0 = arith.constant 0 : i32
    return %arg0, %arg1, %c0_i32 : i32, i32, i32
  }
}

</mosaic_0001>

<llo_original>
// kernel: tpu_custom_call.1
$region0: #{tpu_custom_call.1}
  #allocation0 [shape = 'u32[]', space=smem, size = 0x4, offset = 0x4, fixed_abs, tag = 'smem constant byte address 0x4 - core index']
  #allocation1 [shape = 'u32[144,128]{1,0:T(1,128)}', space=vmem, size = 0x12000, scoped, tag = 'internal scratch']
  %s0 = inlined_call_operand.hbm [shape: f32[2,8,32], index: 0, kind: input, shape index: {}]
  %s1 = inlined_call_operand.hbm [shape: f32[2,8,32], index: 1, kind: input, shape index: {}]
  %s2 = inlined_call_operand.hbm [shape: f32[32,128], index: 2, kind: input, shape index: {}]
  %s3 = inlined_call_operand.hbm [shape: f32[32,128], index: 3, kind: input, shape index: {}]
  %s4 = inlined_call_operand.hbm [shape: f32[2,8,256], index: 4, kind: output, shape index: {}]
  %s5 = sld [smem:[#allocation0]]
  $region65: #{tpu_custom_call.1} parent=0
    _
  %s7 = ssub.s32 1, %s5
  %s8 = scalar_select 0, %s7, %s5
  $region1: #{tpu_custom_call.1} parent=0
    #allocation2 [shape = 'u8[8192]{0}', space=vmem, size = 0x2000, scoped, tag = 'input window, operand 0']
    #allocation3 [shape = 's32[2]{0}', space=sflag, size = 0x8, scoped, tag = 'scoped memory for tpu_custom_call.1']
    #allocation4 [shape = 's32[2]{0}', space=sflag, size = 0x8, scoped, tag = 'scoped memory for tpu_custom_call.1']
    #allocation5 [shape = 'u8[8192]{0}', space=vmem, size = 0x2000, scoped, tag = 'input window, operand 1']
    #allocation6 [shape = 's32[2]{0}', space=sflag, size = 0x8, scoped, tag = 'scoped memory for tpu_custom_call.1']
    #allocation7 [shape = 'u8[16384]{0}', space=vmem, size = 0x4000, scoped, tag = 'input window, operand 2, single buffered']
    #allocation8 [shape = 'u8[16384]{0}', space=vmem, size = 0x4000, scoped, tag = 'input window, operand 3, single buffered']
    #allocation9 [shape = 's32[1]{0}', space=sflag, size = 0x4, scoped, tag = 'scoped memory for tpu_custom_call.1']
    #allocation10 [shape = 'u8[16384]{0}', space=vmem, size = 0x4000, scoped, tag = 'output window, operand 0']
    %9 = vsyncpa [#allocation3], 0
    %s10 = scalar_lea.sflag [#allocation3], 1
    %11 = vsyncpa %s10, 0
    %12 = vsyncpa [#allocation6], 0
    %s13 = scalar_lea.sflag [#allocation6], 1
    %14 = vsyncpa %s13, 0
    %15 = vsyncpa [#allocation9], 0
    %16 = vsyncpa [#allocation4], 0
    %s17 = scalar_lea.sflag [#allocation4], 1
    %18 = vsyncpa %s17, 0
    loop: start=0, step=1, limit=4
    $region2: #{tpu_custom_call.1} parent=1 // loop_pre_header
      _
    $region3: #{tpu_custom_call.1} parent=1 // loop_header
      %s20 = sphi 0, %s24
      %p21 = scmp.ge.s32.totalorder %s20, 4
      %s27 = sphi 0, %s39
      %s28 = sphi 0, %s35
      %s29 = sphi 0, %s27
      %s30 = sphi 0, %s28
      %s31 = sphi 0, %s29
      %s32 = sphi 0, %s30
      %s44 = sphi 0, %s46
      %s47 = sphi 0, %s44
      %s48 = sphi 0, %s47
      %s64 = sphi 0, %s48
      %s72 = sphi 0, %s74
      %s75 = sphi 0, %s72
      %s76 = sphi 0, %s75
      %s92 = sphi 0, %s76
      %s96 = sphi 0, %s96
      %s98 = sphi 0, %s96
      %s99 = sphi 0, %s98
      %s113 = sphi 0, %s99
      %s117 = sphi 0, %s117
      %s119 = sphi 0, %s117
      %s120 = sphi 0, %s119
      %s134 = sphi 0, %s120
      %s142 = sphi 0, %s144
      %s145 = sphi 0, %s142
      %s146 = sphi 0, %s145
      %s162 = sphi 0, %s146
    $region4: #{tpu_custom_call.1} parent=1 // loop_header_branch
      %23 = sbr.rel (%p21) target = $region8
    $region5: #{tpu_custom_call.1} parent=1 // loop_body
      %s25 = ssub.s32 %s20, 1
      %s26 = ssub.s32 %s20, 2
      %s33 = sadd.s32 1, %s28
      %p34 = scmp.ge.s32.totalorder %s33, 1
      %s35 = scalar_select %p34, 0, %s33
      %s36 = sadd.s32 1, %s27
      %s37 = scalar_select %p34, %s36, %s27
      %p38 = scmp.ge.s32.totalorder %s37, 2
      %s39 = scalar_select %p38, 0, %s37
      %s40 = ssub.s32 %s27, %s39
      %s41 = ssub.s32 %s28, %s35
      %s42 = sor.u32 %s40, %s41
      %p43 = scmp.eq.s32.totalorder %s42, 0
      %s45 = sadd.s32 %s44, 1
      %s46 = scalar_select %p43, %s44, %s45
      %p49 = pneg %p43
      %p50 = scmp.eq.s32.totalorder %s20, 1
      %p51 = por %p49, %p50
      %p52 = scmp.ne.s32.totalorder %s44, %s47
      %p53 = scmp.eq.s32.totalorder %s20, 0
      %p54 = por %p52, %p53
      %p55 = scmp.ne.s32.totalorder %s44, %s47
      %p56 = scmp.eq.s32.totalorder %s25, 1
      %p57 = por %p55, %p56
      %p58 = scmp.ne.s32.totalorder %s47, %s48
      %p59 = scmp.eq.s32.totalorder %s25, 0
      %p60 = por %p58, %p59
      %p61 = scmp.ne.s32.totalorder %s47, %s48
      %p62 = scmp.eq.s32.totalorder %s26, 1
      %p63 = por %p61, %p62
      %p65 = scmp.ne.s32.totalorder %s48, %s64
      %p66 = scmp.eq.s32.totalorder %s26, 0
      %p67 = por %p65, %p66
      %s68 = ssub.s32 %s27, %s39
      %s69 = ssub.s32 %s28, %s35
      %s70 = sor.u32 %s68, %s69
      %p71 = scmp.eq.s32.totalorder %s70, 0
      %s73 = sadd.s32 %s72, 1
      %s74 = scalar_select %p71, %s72, %s73
      %p77 = pneg %p71
      %p78 = scmp.eq.s32.totalorder %s20, 1
      %p79 = por %p77, %p78
      %p80 = scmp.ne.s32.totalorder %s72, %s75
      %p81 = scmp.eq.s32.totalorder %s20, 0
      %p82 = por %p80, %p81
      %p83 = scmp.ne.s32.totalorder %s72, %s75
      %p84 = scmp.eq.s32.totalorder %s25, 1
      %p85 = por %p83, %p84
      %p86 = scmp.ne.s32.totalorder %s75, %s76
      %p87 = scmp.eq.s32.totalorder %s25, 0
      %p88 = por %p86, %p87
      %p89 = scmp.ne.s32.totalorder %s75, %s76
      %p90 = scmp.eq.s32.totalorder %s26, 1
      %p91 = por %p89, %p90
      %p93 = scmp.ne.s32.totalorder %s76, %s92
      %p94 = scmp.eq.s32.totalorder %s26, 0
      %p95 = por %p93, %p94
      %s97 = sadd.s32 %s96, 1
      %p100 = scmp.eq.s32.totalorder %s20, 1
      %p101 = scmp.ne.s32.totalorder %s96, %s98
      %p102 = scmp.eq.s32.totalorder %s20, 0
      %p103 = por %p101, %p102
      %p104 = scmp.ne.s32.totalorder %s96, %s98
      %p105 = scmp.eq.s32.totalorder %s25, 1
      %p106 = por %p104, %p105
      %p107 = scmp.ne.s32.totalorder %s98, %s99
      %p108 = scmp.eq.s32.totalorder %s25, 0
      %p109 = por %p107, %p108
      %p110 = scmp.ne.s32.totalorder %s98, %s99
      %p111 = scmp.eq.s32.totalorder %s26, 1
      %p112 = por %p110, %p111
      %p114 = scmp.ne.s32.totalorder %s99, %s113
      %p115 = scmp.eq.s32.totalorder %s26, 0
      %p116 = por %p114, %p115
      %s118 = sadd.s32 %s117, 1
      %p121 = scmp.eq.s32.totalorder %s20, 1
      %p122 = scmp.ne.s32.totalorder %s117, %s119
      %p123 = scmp.eq.s32.totalorder %s20, 0
      %p124 = por %p122, %p123
      %p125 = scmp.ne.s32.totalorder %s117, %s119
      %p126 = scmp.eq.s32.totalorder %s25, 1
      %p127 = por %p125, %p126
      %p128 = scmp.ne.s32.totalorder %s119, %s120
      %p129 = scmp.eq.s32.totalorder %s25, 0
      %p130 = por %p128, %p129
      %p131 = scmp.ne.s32.totalorder %s119, %s120
      %p132 = scmp.eq.s32.totalorder %s26, 1
      %p133 = por %p131, %p132
      %p135 = scmp.ne.s32.totalorder %s120, %s134
      %p136 = scmp.eq.s32.totalorder %s26, 0
      %p137 = por %p135, %p136
      %s138 = ssub.s32 %s27, %s39
      %s139 = ssub.s32 %s28, %s35
      %s140 = sor.u32 %s138, %s139
      %p141 = scmp.eq.s32.totalorder %s140, 0
      %s143 = sadd.s32 %s142, 1
      %s144 = scalar_select %p141, %s142, %s143
      %p147 = pneg %p141
      %p148 = scmp.eq.s32.totalorder %s20, 1
      %p149 = por %p147, %p148
      %p150 = scmp.ne.s32.totalorder %s142, %s145
      %p151 = scmp.eq.s32.totalorder %s20, 0
      %p152 = por %p150, %p151
      %p153 = scmp.ne.s32.totalorder %s142, %s145
      %p154 = scmp.eq.s32.totalorder %s25, 1
      %p155 = por %p153, %p154
      %p156 = scmp.ne.s32.totalorder %s145, %s146
      %p157 = scmp.eq.s32.totalorder %s25, 0
      %p158 = por %p156, %p157
      %p159 = scmp.ne.s32.totalorder %s145, %s146
      %p160 = scmp.eq.s32.totalorder %s26, 1
      %p161 = por %p159, %p160
      %p163 = scmp.ne.s32.totalorder %s146, %s162
      %p164 = scmp.eq.s32.totalorder %s26, 0
      %p165 = por %p163, %p164
      %p166 = scmp.le.s32.totalorder 1, %s20
      %p167 = scmp.lt.s32.totalorder %s20, 3
      %p168 = pnand %p166, %p167
      %p169 = pneg %p168
      // Predicated region
      $region9: #{tpu_custom_call.1} parent=5 // pred_check
        _
      $region10: #{tpu_custom_call.1} parent=5 // pred_check_branch
        %171 = sbr.rel (%p168) target = $region12
      $region11: #{tpu_custom_call.1} parent=5 // pred_region
        %s172 = ssub.s32 %s20, 1
        // Predicated region
        $region13: #{tpu_custom_call.1} parent=11 // pred_check
          %p173 = pneg %p109
        $region14: #{tpu_custom_call.1} parent=11 // pred_check_branch
          %175 = sbr.rel (%p173) target = $region16
        $region15: #{tpu_custom_call.1} parent=11 // pred_region
          %s177 = ssub.s32 512, 512
          %178 = vsyncadd [#allocation6], %s177
          %s179 = sshll.u32 [#allocation7], 4
          %s180 = int_to_ptr.vmem [resolvable:$true] %s179
          %185 = dma.hbm_to_vmem [thread:$0]  %s2, 512, %s180, [#allocation6], 128, 128, 8
        $region16: #{tpu_custom_call.1} parent=11 // pred_fallthru
          _
        // Predicated region
        $region17: #{tpu_custom_call.1} parent=11 // pred_check
          %p186 = pneg %p130
        $region18: #{tpu_custom_call.1} parent=11 // pred_check_branch
          %188 = sbr.rel (%p186) target = $region20
        $region19: #{tpu_custom_call.1} parent=11 // pred_region
          %s190 = ssub.s32 512, 512
          %191 = vsyncadd [#allocation9], %s190
          %s192 = sshll.u32 [#allocation8], 4
          %s193 = int_to_ptr.vmem [resolvable:$true] %s192
          %198 = dma.hbm_to_vmem [thread:$0]  %s3, 512, %s193, [#allocation9], 128, 128, 8
        $region20: #{tpu_custom_call.1} parent=11 // pred_fallthru
          _
      $region12: #{tpu_custom_call.1} parent=5 // pred_fallthru
        _
      %p199 = scmp.lt.s32.totalorder %s20, 2
      // Predicated region
      $region21: #{tpu_custom_call.1} parent=5 // pred_check
        %p200 = pneg %p199
      $region22: #{tpu_custom_call.1} parent=5 // pred_check_branch
        %202 = sbr.rel (%p200) target = $region24
      $region23: #{tpu_custom_call.1} parent=5 // pred_region
        // Predicated region
        $region25: #{tpu_custom_call.1} parent=23 // pred_check
          %p203 = pneg %p54
        $region26: #{tpu_custom_call.1} parent=23 // pred_check_branch
          %205 = sbr.rel (%p203) target = $region28
        $region27: #{tpu_custom_call.1} parent=23 // pred_region
          %s206 = sand.u32 %s44, 1
          %s207 = scalar_lea.sflag [#allocation3], %s206
          %s208 = sand.u32 %s44, 1
          %s209 = smul.addr %s208, 8
          %s210 = scalar_lea.vmem [#allocation2], %s209
          %s212 = ssub.s32 128, 128
          %213 = vsyncadd %s207, %s212
          %s214 = sadd.s32 %s28, %s27
          %s215 = smul.addr %s214, 128
          %s216 = scalar_lea.hbm %s0, %s215
          %s218 = sshll.u32 %s210, 4
          %s219 = int_to_ptr.vmem [resolvable:$true] %s218
          %221 = dma.hbm_to_vmem [thread:$0]  %s216, 128, %s219, %s207
        $region28: #{tpu_custom_call.1} parent=23 // pred_fallthru
          _
        // Predicated region
        $region29: #{tpu_custom_call.1} parent=23 // pred_check
          %p222 = pneg %p82
        $region30: #{tpu_custom_call.1} parent=23 // pred_check_branch
          %224 = sbr.rel (%p222) target = $region32
        $region31: #{tpu_custom_call.1} parent=23 // pred_region
          %s225 = sand.u32 %s20, 1
          %s226 = scalar_lea.sflag [#allocation6], %s225
          %s227 = sand.u32 %s72, 1
          %s228 = smul.addr %s227, 8
          %s229 = scalar_lea.vmem [#allocation5], %s228
          %s231 = ssub.s32 128, 128
          %232 = vsyncadd %s226, %s231
          %s233 = sadd.s32 %s28, %s27
          %s234 = smul.addr %s233, 128
          %s235 = scalar_lea.hbm %s1, %s234
          %s237 = sshll.u32 %s229, 4
          %s238 = int_to_ptr.vmem [resolvable:$true] %s237
          %240 = dma.hbm_to_vmem [thread:$0]  %s235, 128, %s238, %s226
        $region32: #{tpu_custom_call.1} parent=23 // pred_fallthru
          _
      $region24: #{tpu_custom_call.1} parent=5 // pred_fallthru
        _
      %p241 = scmp.le.s32.totalorder 1, %s20
      %p242 = scmp.lt.s32.totalorder %s20, 3
      %p243 = pnand %p241, %p242
      %p244 = pneg %p243
      // Predicated region
      $region33: #{tpu_custom_call.1} parent=5 // pred_check
        _
      $region34: #{tpu_custom_call.1} parent=5 // pred_check_branch
        %246 = sbr.rel (%p243) target = $region36
      $region35: #{tpu_custom_call.1} parent=5 // pred_region
        %s247 = ssub.s32 %s20, 1
        %s248 = sand.u32 %s47, 1
        %s249 = scalar_lea.sflag [#allocation3], %s248
        %s250 = sand.u32 %s47, 1
        %s251 = smul.addr %s250, 8
        %s252 = scalar_lea.vmem [#allocation2], %s251
        // Predicated region
        $region37: #{tpu_custom_call.1} parent=35 // pred_check
          %p253 = pneg %p60
        $region38: #{tpu_custom_call.1} parent=35 // pred_check_branch
          %255 = sbr.rel (%p253) target = $region40
        $region39: #{tpu_custom_call.1} parent=35 // pred_region
          %256 = dma.done %s249, 128
        $region40: #{tpu_custom_call.1} parent=35 // pred_fallthru
          _
        %s257 = sand.u32 %s25, 1
        %s258 = scalar_lea.sflag [#allocation6], %s257
        %s259 = sand.u32 %s75, 1
        %s260 = smul.addr %s259, 8
        %s261 = scalar_lea.vmem [#allocation5], %s260
        // Predicated region
        $region41: #{tpu_custom_call.1} parent=35 // pred_check
          %p262 = pneg %p88
        $region42: #{tpu_custom_call.1} parent=35 // pred_check_branch
          %264 = sbr.rel (%p262) target = $region44
        $region43: #{tpu_custom_call.1} parent=35 // pred_region
          %265 = dma.done %s258, 128
        $region44: #{tpu_custom_call.1} parent=35 // pred_fallthru
          _
        // Predicated region
        $region45: #{tpu_custom_call.1} parent=35 // pred_check
          %p266 = pneg %p109
        $region46: #{tpu_custom_call.1} parent=35 // pred_check_branch
          %268 = sbr.rel (%p266) target = $region48
        $region47: #{tpu_custom_call.1} parent=35 // pred_region
          %269 = dma.done [#allocation6], 512
        $region48: #{tpu_custom_call.1} parent=35 // pred_fallthru
          _
        // Predicated region
        $region49: #{tpu_custom_call.1} parent=35 // pred_check
          %p270 = pneg %p130
        $region50: #{tpu_custom_call.1} parent=35 // pred_check_branch
          %272 = sbr.rel (%p270) target = $region52
        $region51: #{tpu_custom_call.1} parent=35 // pred_region
          %273 = dma.done [#allocation9], 512
        $region52: #{tpu_custom_call.1} parent=35 // pred_fallthru
          _
        %s274 = sand.u32 %s47, 1
        %s275 = scalar_lea.sflag [#allocation3], %s274
        %s276 = sand.u32 %s47, 1
        %s277 = smul.addr %s276, 8
        %s278 = scalar_lea.vmem [#allocation2], %s277
        %p279 = pneg %p60
        %p280 = pneg %p57
        %s281 = sand.u32 %s25, 1
        %s282 = scalar_lea.sflag [#allocation6], %s281
        %s283 = sand.u32 %s75, 1
        %s284 = smul.addr %s283, 8
        %s285 = scalar_lea.vmem [#allocation5], %s284
        %p286 = pneg %p88
        %p287 = pneg %p85
        %p288 = pneg %p109
        %p289 = pneg %p106
        %p290 = pneg %p130
        %p291 = pneg %p127
        %p292 = pneg %p158
        %p293 = pneg %p155
        %s294 = sand.u32 %s145, 1
        %s295 = scalar_lea.sflag [#allocation4], %s294
        %s296 = sand.u32 %s145, 1
        %s297 = smul.addr %s296, 16
        %s298 = scalar_lea.vmem [#allocation10], %s297
        %v299 = vld [vmem:[%s252] sm:$0xff]
        %v300 = vld [vmem:[#allocation7] sm:$0xff]
        %v301 = vld [vmem:[#allocation7 + $0x8] sm:$0xff]
        %v302 = vld [vmem:[#allocation7 + $0x10] sm:$0xff]
        %v303 = vld [vmem:[#allocation7 + $0x18] sm:$0xff]
        %vm304 = vcmask 261120
        %v306 = vsel %vm304, %v299, 0
        %308 = vmatprep.subr.mxu0 0.0
        %309 = vmatpush1.msra.mxu0 %v300
        %310 = vmatprep.subr.mxu0 0.0
        %311 = vmatpush1.msra.mxu0 %v301
        %312 = vmatprep.subr.mxu0 0.0
        %313 = vmatpush1.msra.mxu0 %v302
        %314 = vmatprep.subr.mxu0 0.0
        %315 = vmatpush1.msra.mxu0 %v303
        %316 = vmatprep.subr.mxu0 0.0
        %317 = vmatpush1.msra.mxu0 0.0
        %318 = vmatprep.subr.mxu0 0.0
        %319 = vmatpush1.msra.mxu0 0.0
        %320 = vmatprep.subr.mxu0 0.0
        %321 = vmatpush1.msra.mxu0 0.0
        %322 = vmatprep.subr.mxu0 0.0
        %323 = vmatpush1.msra.mxu0 0.0
        %324 = vmatprep.subr.mxu0 0.0
        %325 = vmatpush1.msra.mxu0 0.0
        %326 = vmatprep.subr.mxu0 0.0
        %327 = vmatpush1.msra.mxu0 0.0
        %328 = vmatprep.subr.mxu0 0.0
        %329 = vmatpush1.msra.mxu0 0.0
        %330 = vmatprep.subr.mxu0 0.0
        %331 = vmatpush1.msra.mxu0 0.0
        %332 = vmatprep.subr.mxu0 0.0
        %333 = vmatpush1.msra.mxu0 0.0
        %334 = vmatprep.subr.mxu0 0.0
        %335 = vmatpush1.msra.mxu0 0.0
        %336 = vmatprep.subr.mxu0 0.0
        %337 = vmatpush1.msra.mxu0 0.0
        %338 = vmatprep.subr.mxu0 0.0
        %339 = vmatpush1.msra.mxu0 0.0
        %340 = vmatprep.subr.mxu0 0.0
        %341 = vmatpush1.msra.mxu0 0.0
        %342 = vmatprep.subr.mxu0 0.0
        %343 = vmatpush1.msra.mxu0 0.0
        %344 = vmatprep.subr.mxu0 0.0
        %345 = vmatpush1.msra.mxu0 0.0
        %346 = vmatprep.subr.mxu0 0.0
        %347 = vmatpush1.msra.mxu0 0.0
        %348 = vmatprep.subr.mxu0 0.0
        %349 = vmatpush1.msra.mxu0 0.0
        %350 = vmatprep.subr.mxu0 0.0
        %351 = vmatpush1.msra.mxu0 0.0
        %352 = vmatprep.subr.mxu0 0.0
        %353 = vmatpush1.msra.mxu0 0.0
        %354 = vmatprep.subr.mxu0 0.0
        %355 = vmatpush1.msra.mxu0 0.0
        %356 = vmatprep.subr.mxu0 0.0
        %357 = vmatpush1.msra.mxu0 0.0
        %358 = vmatprep.subr.mxu0 0.0
        %359 = vmatpush1.msra.mxu0 0.0
        %360 = vmatprep.subr.mxu0 0.0
        %361 = vmatpush1.msra.mxu0 0.0
        %362 = vmatprep.subr.mxu0 0.0
        %363 = vmatpush1.msra.mxu0 0.0
        %364 = vmatprep.subr.mxu0 0.0
        %365 = vmatpush1.msra.mxu0 0.0
        %366 = vmatprep.subr.mxu0 0.0
        %367 = vmatpush1.msra.mxu0 0.0
        %368 = vmatprep.subr.mxu0 0.0
        %369 = vmatpush1.msra.mxu0 0.0
        %370 = vmatprep.subr.mxu0 0.0
        %371 = vmatpush1.msra.mxu0 0.0
        %372 = vmatprep.mubr.f32.mxu0 0.0
        %373 = vmatmul.mubr.f32.gmra.mrb[0].mxu0 %v306
        %v374 = vpop.f32.mrb[0].mxu0
        %v375 = vadd.f32 0.0, %v374
        %v376 = vpop.f32.mrb[0].mxu0
        %377 = vdwg.mxu0
        %v378 = vld [vmem:[%s261] sm:$0xff]
        %v379 = vld [vmem:[#allocation8] sm:$0xff]
        %v380 = vld [vmem:[#allocation8 + $0x8] sm:$0xff]
        %v381 = vld [vmem:[#allocation8 + $0x10] sm:$0xff]
        %v382 = vld [vmem:[#allocation8 + $0x18] sm:$0xff]
        %v384 = vsel %vm304, %v378, 0
        %386 = vmatprep.subr.mxu0 0.0
        %387 = vmatpush1.msra.mxu0 %v379
        %388 = vmatprep.subr.mxu0 0.0
        %389 = vmatpush1.msra.mxu0 %v380
        %390 = vmatprep.subr.mxu0 0.0
        %391 = vmatpush1.msra.mxu0 %v381
        %392 = vmatprep.subr.mxu0 0.0
        %393 = vmatpush1.msra.mxu0 %v382
        %394 = vmatprep.subr.mxu0 0.0
        %395 = vmatpush1.msra.mxu0 0.0
        %396 = vmatprep.subr.mxu0 0.0
        %397 = vmatpush1.msra.mxu0 0.0
        %398 = vmatprep.subr.mxu0 0.0
        %399 = vmatpush1.msra.mxu0 0.0
        %400 = vmatprep.subr.mxu0 0.0
        %401 = vmatpush1.msra.mxu0 0.0
        %402 = vmatprep.subr.mxu0 0.0
        %403 = vmatpush1.msra.mxu0 0.0
        %404 = vmatprep.subr.mxu0 0.0
        %405 = vmatpush1.msra.mxu0 0.0
        %406 = vmatprep.subr.mxu0 0.0
        %407 = vmatpush1.msra.mxu0 0.0
        %408 = vmatprep.subr.mxu0 0.0
        %409 = vmatpush1.msra.mxu0 0.0
        %410 = vmatprep.subr.mxu0 0.0
        %411 = vmatpush1.msra.mxu0 0.0
        %412 = vmatprep.subr.mxu0 0.0
        %413 = vmatpush1.msra.mxu0 0.0
        %414 = vmatprep.subr.mxu0 0.0
        %415 = vmatpush1.msra.mxu0 0.0
        %416 = vmatprep.subr.mxu0 0.0
        %417 = vmatpush1.msra.mxu0 0.0
        %418 = vmatprep.subr.mxu0 0.0
        %419 = vmatpush1.msra.mxu0 0.0
        %420 = vmatprep.subr.mxu0 0.0
        %421 = vmatpush1.msra.mxu0 0.0
        %422 = vmatprep.subr.mxu0 0.0
        %423 = vmatpush1.msra.mxu0 0.0
        %424 = vmatprep.subr.mxu0 0.0
        %425 = vmatpush1.msra.mxu0 0.0
        %426 = vmatprep.subr.mxu0 0.0
        %427 = vmatpush1.msra.mxu0 0.0
        %428 = vmatprep.subr.mxu0 0.0
        %429 = vmatpush1.msra.mxu0 0.0
        %430 = vmatprep.subr.mxu0 0.0
        %431 = vmatpush1.msra.mxu0 0.0
        %432 = vmatprep.subr.mxu0 0.0
        %433 = vmatpush1.msra.mxu0 0.0
        %434 = vmatprep.subr.mxu0 0.0
        %435 = vmatpush1.msra.mxu0 0.0
        %436 = vmatprep.subr.mxu0 0.0
        %437 = vmatpush1.msra.mxu0 0.0
        %438 = vmatprep.subr.mxu0 0.0
        %439 = vmatpush1.msra.mxu0 0.0
        %440 = vmatprep.subr.mxu0 0.0
        %441 = vmatpush1.msra.mxu0 0.0
        %442 = vmatprep.subr.mxu0 0.0
        %443 = vmatpush1.msra.mxu0 0.0
        %444 = vmatprep.subr.mxu0 0.0
        %445 = vmatpush1.msra.mxu0 0.0
        %446 = vmatprep.subr.mxu0 0.0
        %447 = vmatpush1.msra.mxu0 0.0
        %448 = vmatprep.subr.mxu0 0.0
        %449 = vmatpush1.msra.mxu0 0.0
        %450 = vmatprep.mubr.f32.mxu0 0.0
        %451 = vmatmul.mubr.f32.gmra.mrb[0].mxu0 %v384
        %v452 = vpop.f32.mrb[0].mxu0
        %v453 = vadd.f32 0.0, %v452
        %v454 = vpop.f32.mrb[0].mxu0
        %455 = vdwg.mxu0
        %456 = vst [vmem:[%s298] sm:$0xff] %v375
        %457 = vst [vmem:[%s298 + $0x8] sm:$0xff] %v453
        %s458 = sand.u32 %s145, 1
        %s459 = scalar_lea.sflag [#allocation4], %s458
        %s460 = sand.u32 %s145, 1
        %s461 = smul.addr %s460, 16
        %s462 = scalar_lea.vmem [#allocation10], %s461
        // Predicated region
        $region53: #{tpu_custom_call.1} parent=35 // pred_check
          %p463 = pneg %p155
        $region54: #{tpu_custom_call.1} parent=35 // pred_check_branch
          %465 = sbr.rel (%p463) target = $region56
        $region55: #{tpu_custom_call.1} parent=35 // pred_region
          %s467 = ssub.s32 256, 256
          %468 = vsyncadd %s459, %s467
          %s469 = smul.addr %s30, 2
          %s470 = smul.addr %s29, 2
          %s471 = sadd.s32 %s469, %s470
          %s472 = smul.addr %s471, 128
          %s473 = scalar_lea.hbm %s4, %s472
          %s475 = sshll.u32 %s462, 4
          %s476 = int_to_ptr.vmem [resolvable:$true] %s475
          %478 = dma.vmem_to_hbm [thread:$0]  %s476, 256, %s473, %s459
        $region56: #{tpu_custom_call.1} parent=35 // pred_fallthru
          _
      $region36: #{tpu_custom_call.1} parent=5 // pred_fallthru
        _
      %p479 = scmp.le.s32.totalorder 2, %s20
      // Predicated region
      $region57: #{tpu_custom_call.1} parent=5 // pred_check
        %p480 = pneg %p479
      $region58: #{tpu_custom_call.1} parent=5 // pred_check_branch
        %482 = sbr.rel (%p480) target = $region60
      $region59: #{tpu_custom_call.1} parent=5 // pred_region
        %s483 = ssub.s32 %s20, 2
        // Predicated region
        $region61: #{tpu_custom_call.1} parent=59 // pred_check
          %p484 = pneg %p161
        $region62: #{tpu_custom_call.1} parent=59 // pred_check_branch
          %486 = sbr.rel (%p484) target = $region64
        $region63: #{tpu_custom_call.1} parent=59 // pred_region
          %s487 = sand.u32 %s146, 1
          %s488 = scalar_lea.sflag [#allocation4], %s487
          %s489 = sand.u32 %s146, 1
          %s490 = smul.addr %s489, 16
          %s491 = scalar_lea.vmem [#allocation10], %s490
          %492 = dma.done %s488, 256
        $region64: #{tpu_custom_call.1} parent=59 // pred_fallthru
          _
      $region60: #{tpu_custom_call.1} parent=5 // pred_fallthru
        _
    $region6: #{tpu_custom_call.1} parent=1 // loop_footer
      %s24 = sadd.s32 1, %s20
    $region7: #{tpu_custom_call.1} parent=1 // loop_footer_branch
      %19 = sbr.rel target = $region3
    $region8: #{tpu_custom_call.1} parent=1 // loop_exit
      _
    %493 = vsyncpa [#allocation3], 1
    %s494 = scalar_lea.sflag [#allocation3], 1
    %495 = vsyncpa %s494, 1
    %496 = vsyncpa [#allocation6], 1
    %s497 = scalar_lea.sflag [#allocation6], 1
    %498 = vsyncpa %s497, 1
    %499 = vsyncpa [#allocation9], 1
    %500 = vsyncpa [#allocation4], 1
    %s501 = scalar_lea.sflag [#allocation4], 1
    %502 = vsyncpa %s501, 1

</llo_original>
